<compile_context>
chip_gen: v6e
topology: v6e:2x2x1
jax: 0.10.0
libtpu: 0.0.40
codegen_flags: <defaults>
</compile_context>

<pallas_src>
import jax
import jax.numpy as jnp
from jax.experimental import pallas as pl
from jax.experimental.pallas import tpu as pltpu


def _hbm_copy_kernel(src_ref, dst_ref, copy_sem):
    # Single whole-array HBM -> HBM DMA. No VMEM bounce, no grid.
    cp = pltpu.make_async_copy(src_ref, dst_ref, copy_sem)
    cp.start()
    cp.wait()


def _pallas_materialized_copy(x):
    """Copy `x` into a fresh buffer via one HBM->HBM async DMA."""
    return pl.pallas_call(
        _hbm_copy_kernel,
        out_shape=jax.ShapeDtypeStruct(x.shape, x.dtype),
        in_specs=[pl.BlockSpec(memory_space=pl.ANY)],
        out_specs=pl.BlockSpec(memory_space=pl.ANY),
        scratch_shapes=[pltpu.SemaphoreType.DMA(())],
    )(x)


def dummy_decoder_forward(tgt, memory, tgt_mask=None, memory_mask=None,
                          tgt_key_padding_mask=None,
                          memory_key_padding_mask=None,
                          materialize=False):
    """Pallas/JAX implementation of DummyDecoder.forward: returns `memory`.

    Default (materialize=False): zero-copy — returns `memory` directly with
    no kernel launch (the op is the identity; any copy is pure overhead).

    materialize=True: returns a freshly materialized copy of `memory`
    produced by a single-grid-step Pallas kernel that issues one HBM->HBM
    async DMA (use only if downstream code requires a distinct buffer).

    All mask / tgt arguments are accepted for API parity but ignored,
    exactly like the PyTorch module.
    """
    if not materialize:
        return memory
    return _pallas_materialized_copy(memory)


if __name__ == "__main__":
    key = jax.random.PRNGKey(0)
    k_tgt, k_mem = jax.random.split(key)

    S, B, D = 8, 2, 32  # seq, batch, d_model

    tgt = jax.random.normal(k_tgt, (S, B, D), dtype=jnp.float32)
    memory = jax.random.normal(k_mem, (S, B, D), dtype=jnp.float32)

    # Masks (ignored by DummyDecoder, passed for signature parity).
    tgt_mask = jnp.zeros((S, S), dtype=jnp.float32)
    memory_mask = jnp.zeros((S, S), dtype=jnp.float32)
    tgt_key_padding_mask = jnp.zeros((B, S), dtype=jnp.bool_)
    memory_key_padding_mask = jnp.zeros((B, S), dtype=jnp.bool_)

    # Default (recommended) path: no kernel, returns `memory` as-is.
    out_fast = dummy_decoder_forward(tgt, memory, tgt_mask, memory_mask,
                                     tgt_key_padding_mask,
                                     memory_key_padding_mask)
    out_fast = jax.block_until_ready(out_fast)
    assert out_fast.shape == memory.shape and out_fast.dtype == memory.dtype
    assert bool(jnp.all(out_fast == memory))

    # Materialized path: one HBM->HBM async-DMA Pallas kernel.
    out_copy = dummy_decoder_forward(tgt, memory, tgt_mask, memory_mask,
                                     tgt_key_padding_mask,
                                     memory_key_padding_mask,
                                     materialize=True)
    out_copy = jax.block_until_ready(out_copy)
    assert out_copy.shape == memory.shape and out_copy.dtype == memory.dtype
    assert bool(jnp.all(out_copy == memory))

    print("KERNEL_OK")
</pallas_src>

<mosaic_0001>
module attributes {stable_mosaic.version = 11 : i64} {
  func.func @_hbm_copy_kernel(%arg0: memref<8x2x32xf32, #tpu.memory_space<any>>, %arg1: memref<8x2x32xf32, #tpu.memory_space<any>>, %arg2: memref<!tpu.dma_semaphore, #tpu.memory_space<semaphore_mem>>) attributes {dimension_semantics = [], scalar_prefetch = 0 : i64, scratch_operands = 1 : i64, tpu.core_type = #tpu.core_type<tc>} {
    tpu.enqueue_dma source(%arg0 : memref<8x2x32xf32, #tpu.memory_space<any>>) target(%arg1 : memref<8x2x32xf32, #tpu.memory_space<any>>) target_semaphore(%arg2 : memref<!tpu.dma_semaphore, #tpu.memory_space<semaphore_mem>>)
    tpu.wait_dma2 semaphore(%arg2 : memref<!tpu.dma_semaphore, #tpu.memory_space<semaphore_mem>>) src(%arg0 : memref<8x2x32xf32, #tpu.memory_space<any>>) dst(%arg1 : memref<8x2x32xf32, #tpu.memory_space<any>>)
    return
  }
}

</mosaic_0001>

<llo_original>
// kernel: tpu_custom_call.1
$region0: #{tpu_custom_call.1}
  #allocation0 [shape = 'u32[]', space=smem, size = 0x4, offset = 0x4, fixed_abs, tag = 'smem constant byte address 0x4 - core index']
  #allocation1 [shape = 'u32[144,128]{1,0:T(1,128)}', space=vmem, size = 0x12000, scoped, tag = 'internal scratch']
  #allocation2 [shape = 's32[1]{0}', space=sflag, size = 0x4, scoped, tag = 'scratch operand']
  #allocation3 [shape = 's32[]', space=sflag, size = 0x4, offset = 0, fixed_abs, tag = 'sflag constant byte address 0x0 - dummy sync flag']
  #allocation4 [shape = 'u32[0]{0}', space=smem, size = 0, offset = 0, fixed_abs, tag = 'smem constant byte address 0x0 - null']
  %s0 = inlined_call_operand.hbm [shape: f32[8,2,32], index: 0, kind: input, shape index: {}]
  %s1 = inlined_call_operand.hbm [shape: f32[8,2,32], index: 1, kind: output, shape index: {}]
  %s2 = sld [smem:[#allocation0]]
  $region2: #{tpu_custom_call.1} parent=0
    _
  %s4 = ssub.s32 1, %s2
  %s5 = scalar_select 0, %s4, %s2
  %s7 = sshll.u32 1, 14
  %s8 = sxor.u32 4294967295, %s7
  %12 = dma.general %s0, 256, %s1, [#allocation2], 131072, [#allocation4], 0, 0
  %s13 = smul.u32 8, 2
  %s14 = smul.u32 %s13, 1
  %s15 = sshll.u32 %s14, 4
  %16 = dma.done [#allocation2], %s15
  %17 = vsyncmov [#allocation2]
  %s18 = vpop.sfrf %17
  %p19 = scmp.eq.s32.totalorder %s18, 0
  %p20 = pneg %p19
  %22 = shalt.err (%p20)

</llo_original>
